<compile_context>
chip_gen: v7x
topology: tpu7x:2x2x1
jax: 0.10.0
libtpu: 0.0.40
codegen_flags: <defaults>
</compile_context>

<pallas_src>
import jax
import jax.numpy as jnp
from jax.experimental import pallas as pl
from jax.experimental.pallas import tpu as pltpu

IN_FEATURES = 5 * 8 * 4          # 160
H1, H2, OUT = 256, 512, 256
MAX_TILE = 1024                  # rows per grid step (fits easily in 32 MiB VMEM)


def mlp_softmax_kernel(x_ref, w1_ref, b1_ref, w2_ref, b2_ref, w3_ref, b3_ref, o_ref):
    # Linear(160->256) + ReLU   (x already bf16; f32 accumulation on the MXU)
    h1 = jnp.dot(x_ref[...], w1_ref[...],
                 preferred_element_type=jnp.float32) + b1_ref[...]
    h1 = jnp.maximum(h1, 0.0)
    # Linear(256->512) + ReLU
    h2 = jnp.dot(h1.astype(jnp.bfloat16), w2_ref[...],
                 preferred_element_type=jnp.float32) + b2_ref[...]
    h2 = jnp.maximum(h2, 0.0)
    # Linear(512->256)
    logits = jnp.dot(h2.astype(jnp.bfloat16), w3_ref[...],
                     preferred_element_type=jnp.float32) + b3_ref[...]
    # Row-wise softmax.  (PyTorch Softmax(dim=0) on the 1-D per-sample vector is
    # a per-sample softmax; the batched kernel replicates that semantics per row.)
    m = jnp.max(logits, axis=-1, keepdims=True)
    e = jnp.exp(logits - m)
    o_ref[...] = e * pl.reciprocal(jnp.sum(e, axis=-1, keepdims=True), approx=True)


def _round_up(n, m):
    return ((n + m - 1) // m) * m


def model_forward_batch(xs, params):
    """xs: (B, 5, 8, 4) float -> (B, 256) per-sample softmax rows (f32)."""
    w1, b1, w2, b2, w3, b3 = params
    B = xs.shape[0]
    x_flat = xs.reshape(B, IN_FEATURES).astype(jnp.bfloat16)     # stream x in bf16

    # Batch tiling: >= 2 tiles whenever B >= 16 so the "parallel" batch axis has
    # work for both v7x TensorCores; tiles capped at MAX_TILE rows.
    B8 = _round_up(B, 8)
    if B8 >= 16:
        TB = min(_round_up(pl.cdiv(B8, 2), 8), MAX_TILE)
    else:
        TB = B8
    B_pad = _round_up(B8, TB)
    num_tiles = B_pad // TB

    # Single pad op — avoids the zeros+scatter full-array rewrite in HBM.
    x_pad = jnp.pad(x_flat, ((0, B_pad - B), (0, 0)))

    cost = pl.CostEstimate(
        flops=2 * B_pad * (IN_FEATURES * H1 + H1 * H2 + H2 * OUT),
        transcendentals=B_pad * OUT,
        bytes_accessed=(w1.size + w2.size + w3.size) * 2          # bf16 weights
                       + (b1.size + b2.size + b3.size) * 4        # f32 biases
                       + B_pad * IN_FEATURES * 2                  # bf16 x stream
                       + B_pad * OUT * 4,                         # f32 out stream
    )

    out = pl.pallas_call(
        mlp_softmax_kernel,
        out_shape=jax.ShapeDtypeStruct((B_pad, OUT), jnp.float32),
        grid=(num_tiles,),
        in_specs=[
            pl.BlockSpec((TB, IN_FEATURES), lambda i: (i, 0)),    # activations stream
            pl.BlockSpec((IN_FEATURES, H1), lambda i: (0, 0)),    # weights stay resident
            pl.BlockSpec((1, H1), lambda i: (0, 0)),
            pl.BlockSpec((H1, H2), lambda i: (0, 0)),
            pl.BlockSpec((1, H2), lambda i: (0, 0)),
            pl.BlockSpec((H2, OUT), lambda i: (0, 0)),
            pl.BlockSpec((1, OUT), lambda i: (0, 0)),
        ],
        out_specs=pl.BlockSpec((TB, OUT), lambda i: (i, 0)),
        compiler_params=pltpu.CompilerParams(
            dimension_semantics=("parallel",),        # megacore-shard the batch axis
            vmem_limit_bytes=32 * 1024 * 1024),       # safe on v5e/v6e/v7x, fits TB=1024
        cost_estimate=cost,
    )(x_pad, w1, b1, w2, b2, w3, b3)
    return out[:B]


def model_forward(x, params):
    """Single board (5, 8, 4) -> (256,), matching Model.forward semantics.
    Note: at B~1 wall time is launch + ~0.65 MB weight DMA, so batch requests at
    the caller (model_forward_batch) to amortize weight residency."""
    return model_forward_batch(x[None], params)[0]


def init_params(key):
    """Deterministic init mirroring nn.Linear default (uniform +-1/sqrt(fan_in)).
    Weights stored as (in, out) = transpose of PyTorch (out, in); weights bf16,
    biases f32."""
    dims = [(IN_FEATURES, H1), (H1, H2), (H2, OUT)]
    params = []
    for din, dout in dims:
        key, kw, kb = jax.random.split(key, 3)
        bound = 1.0 / (din ** 0.5)
        w = jax.random.uniform(kw, (din, dout), jnp.float32, -bound, bound)
        b = jax.random.uniform(kb, (1, dout), jnp.float32, -bound, bound)
        params += [w.astype(jnp.bfloat16), b]
    return tuple(params)


def reference_forward_batch(xs, params):
    """Pure-JAX f32 reference (same bf16-stored weights, f32 activations)."""
    w1, b1, w2, b2, w3, b3 = params
    x = xs.reshape(xs.shape[0], IN_FEATURES).astype(jnp.float32)
    h1 = jnp.maximum(x @ w1.astype(jnp.float32) + b1, 0.0)
    h2 = jnp.maximum(h1 @ w2.astype(jnp.float32) + b2, 0.0)
    logits = h2 @ w3.astype(jnp.float32) + b3
    return jax.nn.softmax(logits, axis=-1)


if __name__ == "__main__":
    key = jax.random.PRNGKey(0)
    key, kx = jax.random.split(key)
    params = init_params(key)

    # Small batch of board-state style inputs, each (5, 8, 4).  B=24 exercises
    # the multi-tile (>=2 grid steps) path plus batch padding.
    B = 24
    boards = (jax.random.uniform(kx, (B, 5, 8, 4), jnp.float32) < 0.3).astype(jnp.float32)

    preds = jax.block_until_ready(model_forward_batch(boards, params))
    single = jax.block_until_ready(model_forward(boards[0], params))
    ref = reference_forward_batch(boards, params)

    # Sanity: shapes, each softmax row sums to ~1, and matches the f32 reference
    # (loose tol: bf16 activation stream + approx EUP reciprocal).
    assert preds.shape == (B, 256)
    assert single.shape == (256,)
    sums = jnp.sum(preds, axis=-1)
    assert bool(jnp.all(jnp.abs(sums - 1.0) < 1e-2))
    assert abs(float(jnp.sum(single)) - 1.0) < 1e-2
    assert float(jnp.max(jnp.abs(preds - ref))) < 2e-2
    assert float(jnp.max(jnp.abs(single - ref[0]))) < 2e-2
    print("KERNEL_OK")
</pallas_src>

<mosaic_0001>
module attributes {stable_mosaic.version = 11 : i64} {
  func.func @mlp_softmax_kernel(%arg0: i32, %arg1: memref<16x160xbf16, #tpu.memory_space<vmem>>, %arg2: memref<160x256xbf16, #tpu.memory_space<vmem>>, %arg3: memref<1x256xf32, #tpu.memory_space<vmem>>, %arg4: memref<256x512xbf16, #tpu.memory_space<vmem>>, %arg5: memref<1x512xf32, #tpu.memory_space<vmem>>, %arg6: memref<512x256xbf16, #tpu.memory_space<vmem>>, %arg7: memref<1x256xf32, #tpu.memory_space<vmem>>, %arg8: memref<16x256xf32, #tpu.memory_space<vmem>>) attributes {dimension_semantics = [#tpu.dimension_semantics<parallel>], iteration_bounds = array<i64: 2>, scalar_prefetch = 0 : i64, scratch_operands = 0 : i64, tpu.core_type = #tpu.core_type<tc>, window_params = [{transform_indices = @transform_0, window_bounds = array<i64: 16, 160>}, {pipeline_mode = #tpu.pipeline_mode<synchronous>, transform_indices = @transform_1, window_bounds = array<i64: 160, 256>}, {pipeline_mode = #tpu.pipeline_mode<synchronous>, transform_indices = @transform_2, window_bounds = array<i64: 1, 256>}, {pipeline_mode = #tpu.pipeline_mode<synchronous>, transform_indices = @transform_3, window_bounds = array<i64: 256, 512>}, {pipeline_mode = #tpu.pipeline_mode<synchronous>, transform_indices = @transform_4, window_bounds = array<i64: 1, 512>}, {pipeline_mode = #tpu.pipeline_mode<synchronous>, transform_indices = @transform_5, window_bounds = array<i64: 512, 256>}, {pipeline_mode = #tpu.pipeline_mode<synchronous>, transform_indices = @transform_6, window_bounds = array<i64: 1, 256>}, {transform_indices = @transform_7, window_bounds = array<i64: 16, 256>}]} {
    %c0 = arith.constant 0 : index
    %c0_0 = arith.constant 0 : index
    %0 = vector.load %arg1[%c0, %c0_0] : memref<16x160xbf16, #tpu.memory_space<vmem>>, vector<16x160xbf16>
    %c0_1 = arith.constant 0 : index
    %c0_2 = arith.constant 0 : index
    %1 = vector.load %arg2[%c0_1, %c0_2] : memref<160x256xbf16, #tpu.memory_space<vmem>>, vector<160x256xbf16>
    %cst = arith.constant dense<0.000000e+00> : vector<16x256xf32>
    %2 = tpu.matmul %0, %1, %cst {dimension_numbers = #tpu.dot_dimension_numbers<[1], [0], [0], [1], [0, 0, 1, 1], [], []>} : vector<16x160xbf16>, vector<160x256xbf16>, vector<16x256xf32> -> vector<16x256xf32>
    %c0_3 = arith.constant 0 : index
    %c0_4 = arith.constant 0 : index
    %3 = vector.load %arg3[%c0_3, %c0_4] : memref<1x256xf32, #tpu.memory_space<vmem>>, vector<1x256xf32>
    %4 = vector.broadcast %3 : vector<1x256xf32> to vector<16x256xf32>
    %5 = arith.addf %2, %4 : vector<16x256xf32>
    %cst_5 = arith.constant 0.000000e+00 : f32
    %6 = vector.broadcast %cst_5 : f32 to vector<16x256xf32>
    %7 = arith.maximumf %5, %6 : vector<16x256xf32>
    %8 = arith.truncf %7 : vector<16x256xf32> to vector<16x256xbf16>
    %c0_6 = arith.constant 0 : index
    %c0_7 = arith.constant 0 : index
    %9 = vector.load %arg4[%c0_6, %c0_7] : memref<256x512xbf16, #tpu.memory_space<vmem>>, vector<256x512xbf16>
    %cst_8 = arith.constant dense<0.000000e+00> : vector<16x512xf32>
    %10 = tpu.matmul %8, %9, %cst_8 {dimension_numbers = #tpu.dot_dimension_numbers<[1], [0], [0], [1], [0, 0, 1, 1], [], []>} : vector<16x256xbf16>, vector<256x512xbf16>, vector<16x512xf32> -> vector<16x512xf32>
    %c0_9 = arith.constant 0 : index
    %c0_10 = arith.constant 0 : index
    %11 = vector.load %arg5[%c0_9, %c0_10] : memref<1x512xf32, #tpu.memory_space<vmem>>, vector<1x512xf32>
    %12 = vector.broadcast %11 : vector<1x512xf32> to vector<16x512xf32>
    %13 = arith.addf %10, %12 : vector<16x512xf32>
    %cst_11 = arith.constant 0.000000e+00 : f32
    %14 = vector.broadcast %cst_11 : f32 to vector<16x512xf32>
    %15 = arith.maximumf %13, %14 : vector<16x512xf32>
    %16 = arith.truncf %15 : vector<16x512xf32> to vector<16x512xbf16>
    %c0_12 = arith.constant 0 : index
    %c0_13 = arith.constant 0 : index
    %17 = vector.load %arg6[%c0_12, %c0_13] : memref<512x256xbf16, #tpu.memory_space<vmem>>, vector<512x256xbf16>
    %cst_14 = arith.constant dense<0.000000e+00> : vector<16x256xf32>
    %18 = tpu.matmul %16, %17, %cst_14 {dimension_numbers = #tpu.dot_dimension_numbers<[1], [0], [0], [1], [0, 0, 1, 1], [], []>} : vector<16x512xbf16>, vector<512x256xbf16>, vector<16x256xf32> -> vector<16x256xf32>
    %c0_15 = arith.constant 0 : index
    %c0_16 = arith.constant 0 : index
    %19 = vector.load %arg7[%c0_15, %c0_16] : memref<1x256xf32, #tpu.memory_space<vmem>>, vector<1x256xf32>
    %20 = vector.broadcast %19 : vector<1x256xf32> to vector<16x256xf32>
    %21 = arith.addf %18, %20 : vector<16x256xf32>
    %cst_17 = arith.constant dense<0xFF800000> : vector<16xf32>
    %22 = vector.multi_reduction <maximumf>, %21, %cst_17 [1] : vector<16x256xf32> to vector<16xf32>
    %23 = vector.shape_cast %22 : vector<16xf32> to vector<16x1xf32>
    %24 = vector.broadcast %23 : vector<16x1xf32> to vector<16x256xf32>
    %25 = arith.subf %21, %24 : vector<16x256xf32>
    %26 = math.exp %25 : vector<16x256xf32>
    %cst_18 = arith.constant dense<0.000000e+00> : vector<16xf32>
    %27 = vector.multi_reduction <add>, %26, %cst_18 [1] : vector<16x256xf32> to vector<16xf32>
    %28 = vector.shape_cast %27 : vector<16xf32> to vector<16x1xf32>
    %29 = tpu.reciprocal %28 {approx = true} : vector<16x1xf32> -> vector<16x1xf32>
    %30 = vector.broadcast %29 : vector<16x1xf32> to vector<16x256xf32>
    %31 = arith.mulf %26, %30 : vector<16x256xf32>
    %c0_19 = arith.constant 0 : index
    %c0_20 = arith.constant 0 : index
    %32 = vector.load %arg8[%c0_19, %c0_20] : memref<16x256xf32, #tpu.memory_space<vmem>>, vector<16x256xf32>
    tpu.vector_store %arg8[%c0_19, %c0_20], %31 {strides = array<i32>} : memref<16x256xf32, #tpu.memory_space<vmem>>, vector<16x256xf32>,
    return
  }
  func.func @transform_0(%arg0: i32) -> (i32, i32) {
    %c0_i32 = arith.constant 0 : i32
    %c0_i32_0 = arith.constant 0 : i32
    return %arg0, %c0_i32 : i32, i32
  }
  func.func @transform_1(%arg0: i32) -> (i32, i32) {
    %c0_i32 = arith.constant 0 : i32
    %c0_i32_0 = arith.constant 0 : i32
    %c0_i32_1 = arith.constant 0 : i32
    return %c0_i32, %c0_i32_0 : i32, i32
  }
  func.func @transform_2(%arg0: i32) -> (i32, i32) {
    %c0_i32 = arith.constant 0 : i32
    %c0_i32_0 = arith.constant 0 : i32
    %c0_i32_1 = arith.constant 0 : i32
    return %c0_i32, %c0_i32_0 : i32, i32
  }
  func.func @transform_3(%arg0: i32) -> (i32, i32) {
    %c0_i32 = arith.constant 0 : i32
    %c0_i32_0 = arith.constant 0 : i32
    %c0_i32_1 = arith.constant 0 : i32
    return %c0_i32, %c0_i32_0 : i32, i32
  }
  func.func @transform_4(%arg0: i32) -> (i32, i32) {
    %c0_i32 = arith.constant 0 : i32
    %c0_i32_0 = arith.constant 0 : i32
    %c0_i32_1 = arith.constant 0 : i32
    return %c0_i32, %c0_i32_0 : i32, i32
  }
  func.func @transform_5(%arg0: i32) -> (i32, i32) {
    %c0_i32 = arith.constant 0 : i32
    %c0_i32_0 = arith.constant 0 : i32
    %c0_i32_1 = arith.constant 0 : i32
    return %c0_i32, %c0_i32_0 : i32, i32
  }
  func.func @transform_6(%arg0: i32) -> (i32, i32) {
    %c0_i32 = arith.constant 0 : i32
    %c0_i32_0 = arith.constant 0 : i32
    %c0_i32_1 = arith.constant 0 : i32
    return %c0_i32, %c0_i32_0 : i32, i32
  }
  func.func @transform_7(%arg0: i32) -> (i32, i32) {
    %c0_i32 = arith.constant 0 : i32
    %c0_i32_0 = arith.constant 0 : i32
    return %arg0, %c0_i32 : i32, i32
  }
}

</mosaic_0001>

<llo_original>
// kernel: tpu_custom_call.1
$region0: #{tpu_custom_call.1}
  #allocation0 [shape = 'u32[]', space=smem, size = 0x4, offset = 0x4, fixed_abs, tag = 'smem constant byte address 0x4 - core index']
  #allocation1 [shape = 'u32[144,128]{1,0:T(1,128)}', space=vmem, size = 0x12000, scoped, tag = 'internal scratch']
  %s0 = inlined_call_operand.hbm [shape: bf16[32,160], index: 0, kind: input, shape index: {}]
  %s1 = inlined_call_operand.hbm [shape: bf16[160,256], index: 1, kind: input, shape index: {}]
  %s2 = inlined_call_operand.vmem [shape: f32[1,256], index: 2, kind: input, shape index: {}]
  %s3 = inlined_call_operand.hbm [shape: bf16[256,512], index: 3, kind: input, shape index: {}]
  %s4 = inlined_call_operand.vmem [shape: f32[1,512], index: 4, kind: input, shape index: {}]
  %s5 = inlined_call_operand.hbm [shape: bf16[512,256], index: 5, kind: input, shape index: {}]
  %s6 = inlined_call_operand.vmem [shape: f32[1,256], index: 6, kind: input, shape index: {}]
  %s7 = inlined_call_operand.hbm [shape: f32[32,256], index: 7, kind: output, shape index: {}]
  %s8 = sld [smem:[#allocation0]]
  $region77: #{tpu_custom_call.1} parent=0
    _
  %s10 = ssub.s32 1, %s8
  %s11 = scalar_select 0, %s10, %s8
  $region1: #{tpu_custom_call.1} parent=0
    #allocation2 [shape = 'u8[16384]{0}', space=vmem, size = 0x4000, scoped, tag = 'input window, operand 0']
    #allocation3 [shape = 's32[2]{0}', space=sflag, size = 0x8, scoped, tag = 'scoped memory for tpu_custom_call.1']
    #allocation4 [shape = 's32[2]{0}', space=sflag, size = 0x8, scoped, tag = 'scoped memory for tpu_custom_call.1']
    #allocation5 [shape = 'u8[81920]{0}', space=vmem, size = 0x14000, scoped, tag = 'input window, operand 1, single buffered']
    #allocation6 [shape = 's32[1]{0}', space=sflag, size = 0x4, scoped, tag = 'scoped memory for tpu_custom_call.1']
    #allocation7 [shape = 'u8[262144]{0}', space=vmem, size = 0x40000, scoped, tag = 'input window, operand 3, single buffered']
    #allocation8 [shape = 'u8[262144]{0}', space=vmem, size = 0x40000, scoped, tag = 'input window, operand 5, single buffered']
    #allocation9 [shape = 's32[1]{0}', space=sflag, size = 0x4, scoped, tag = 'scoped memory for tpu_custom_call.1']
    #allocation10 [shape = 'u8[32768]{0}', space=vmem, size = 0x8000, scoped, tag = 'output window, operand 0']
    %12 = vsyncpa [#allocation3], 0
    %s13 = scalar_lea.sflag [#allocation3], 1
    %14 = vsyncpa %s13, 0
    %15 = vsyncpa [#allocation6], 0
    %16 = vsyncpa [#allocation9], 0
    %17 = vsyncpa [#allocation4], 0
    %s18 = scalar_lea.sflag [#allocation4], 1
    %19 = vsyncpa %s18, 0
    loop: start=0, step=1, limit=4
    $region2: #{tpu_custom_call.1} parent=1 // loop_pre_header
      _
    $region3: #{tpu_custom_call.1} parent=1 // loop_header
      %s21 = sphi 0, %s25
      %p22 = scmp.ge.s32.totalorder %s21, 4
      %s31 = sphi 0, %s33
      %s34 = sphi 0, %s31
      %s35 = sphi 0, %s34
      %s51 = sphi 0, %s35
      %s55 = sphi 0, %s55
      %s57 = sphi 0, %s55
      %s58 = sphi 0, %s57
      %s72 = sphi 0, %s58
      %s76 = sphi 0, %s76
      %s78 = sphi 0, %s76
      %s79 = sphi 0, %s78
      %s93 = sphi 0, %s79
      %s97 = sphi 0, %s97
      %s99 = sphi 0, %s97
      %s100 = sphi 0, %s99
      %s114 = sphi 0, %s100
      %s118 = sphi 0, %s118
      %s120 = sphi 0, %s118
      %s121 = sphi 0, %s120
      %s135 = sphi 0, %s121
      %s139 = sphi 0, %s139
      %s141 = sphi 0, %s139
      %s142 = sphi 0, %s141
      %s156 = sphi 0, %s142
      %s160 = sphi 0, %s160
      %s162 = sphi 0, %s160
      %s163 = sphi 0, %s162
      %s177 = sphi 0, %s163
      %s183 = sphi 0, %s185
      %s186 = sphi 0, %s183
      %s187 = sphi 0, %s186
      %s203 = sphi 0, %s187
    $region4: #{tpu_custom_call.1} parent=1 // loop_header_branch
      %24 = sbr.rel (%p22) target = $region8
    $region5: #{tpu_custom_call.1} parent=1 // loop_body
      %s26 = ssub.s32 %s21, 1
      %s27 = ssub.s32 %s21, 2
      %s28 = sadd.s32 %s21, 1
      %s29 = ssub.s32 %s21, %s28
      %p30 = scmp.eq.s32.totalorder %s29, 0
      %s32 = sadd.s32 %s31, 1
      %s33 = scalar_select %p30, %s31, %s32
      %p36 = pneg %p30
      %p37 = scmp.eq.s32.totalorder %s21, 1
      %p38 = por %p36, %p37
      %p39 = scmp.ne.s32.totalorder %s31, %s34
      %p40 = scmp.eq.s32.totalorder %s21, 0
      %p41 = por %p39, %p40
      %p42 = scmp.ne.s32.totalorder %s31, %s34
      %p43 = scmp.eq.s32.totalorder %s26, 1
      %p44 = por %p42, %p43
      %p45 = scmp.ne.s32.totalorder %s34, %s35
      %p46 = scmp.eq.s32.totalorder %s26, 0
      %p47 = por %p45, %p46
      %p48 = scmp.ne.s32.totalorder %s34, %s35
      %p49 = scmp.eq.s32.totalorder %s27, 1
      %p50 = por %p48, %p49
      %p52 = scmp.ne.s32.totalorder %s35, %s51
      %p53 = scmp.eq.s32.totalorder %s27, 0
      %p54 = por %p52, %p53
      %s56 = sadd.s32 %s55, 1
      %p59 = scmp.eq.s32.totalorder %s21, 1
      %p60 = scmp.ne.s32.totalorder %s55, %s57
      %p61 = scmp.eq.s32.totalorder %s21, 0
      %p62 = por %p60, %p61
      %p63 = scmp.ne.s32.totalorder %s55, %s57
      %p64 = scmp.eq.s32.totalorder %s26, 1
      %p65 = por %p63, %p64
      %p66 = scmp.ne.s32.totalorder %s57, %s58
      %p67 = scmp.eq.s32.totalorder %s26, 0
      %p68 = por %p66, %p67
      %p69 = scmp.ne.s32.totalorder %s57, %s58
      %p70 = scmp.eq.s32.totalorder %s27, 1
      %p71 = por %p69, %p70
      %p73 = scmp.ne.s32.totalorder %s58, %s72
      %p74 = scmp.eq.s32.totalorder %s27, 0
      %p75 = por %p73, %p74
      %s77 = sadd.s32 %s76, 1
      %p80 = scmp.eq.s32.totalorder %s21, 1
      %p81 = scmp.ne.s32.totalorder %s76, %s78
      %p82 = scmp.eq.s32.totalorder %s21, 0
      %p83 = por %p81, %p82
      %p84 = scmp.ne.s32.totalorder %s76, %s78
      %p85 = scmp.eq.s32.totalorder %s26, 1
      %p86 = por %p84, %p85
      %p87 = scmp.ne.s32.totalorder %s78, %s79
      %p88 = scmp.eq.s32.totalorder %s26, 0
      %p89 = por %p87, %p88
      %p90 = scmp.ne.s32.totalorder %s78, %s79
      %p91 = scmp.eq.s32.totalorder %s27, 1
      %p92 = por %p90, %p91
      %p94 = scmp.ne.s32.totalorder %s79, %s93
      %p95 = scmp.eq.s32.totalorder %s27, 0
      %p96 = por %p94, %p95
      %s98 = sadd.s32 %s97, 1
      %p101 = scmp.eq.s32.totalorder %s21, 1
      %p102 = scmp.ne.s32.totalorder %s97, %s99
      %p103 = scmp.eq.s32.totalorder %s21, 0
      %p104 = por %p102, %p103
      %p105 = scmp.ne.s32.totalorder %s97, %s99
      %p106 = scmp.eq.s32.totalorder %s26, 1
      %p107 = por %p105, %p106
      %p108 = scmp.ne.s32.totalorder %s99, %s100
      %p109 = scmp.eq.s32.totalorder %s26, 0
      %p110 = por %p108, %p109
      %p111 = scmp.ne.s32.totalorder %s99, %s100
      %p112 = scmp.eq.s32.totalorder %s27, 1
      %p113 = por %p111, %p112
      %p115 = scmp.ne.s32.totalorder %s100, %s114
      %p116 = scmp.eq.s32.totalorder %s27, 0
      %p117 = por %p115, %p116
      %s119 = sadd.s32 %s118, 1
      %p122 = scmp.eq.s32.totalorder %s21, 1
      %p123 = scmp.ne.s32.totalorder %s118, %s120
      %p124 = scmp.eq.s32.totalorder %s21, 0
      %p125 = por %p123, %p124
      %p126 = scmp.ne.s32.totalorder %s118, %s120
      %p127 = scmp.eq.s32.totalorder %s26, 1
      %p128 = por %p126, %p127
      %p129 = scmp.ne.s32.totalorder %s120, %s121
      %p130 = scmp.eq.s32.totalorder %s26, 0
      %p131 = por %p129, %p130
      %p132 = scmp.ne.s32.totalorder %s120, %s121
      %p133 = scmp.eq.s32.totalorder %s27, 1
      %p134 = por %p132, %p133
      %p136 = scmp.ne.s32.totalorder %s121, %s135
      %p137 = scmp.eq.s32.totalorder %s27, 0
      %p138 = por %p136, %p137
      %s140 = sadd.s32 %s139, 1
      %p143 = scmp.eq.s32.totalorder %s21, 1
      %p144 = scmp.ne.s32.totalorder %s139, %s141
      %p145 = scmp.eq.s32.totalorder %s21, 0
      %p146 = por %p144, %p145
      %p147 = scmp.ne.s32.totalorder %s139, %s141
      %p148 = scmp.eq.s32.totalorder %s26, 1
      %p149 = por %p147, %p148
      %p150 = scmp.ne.s32.totalorder %s141, %s142
      %p151 = scmp.eq.s32.totalorder %s26, 0
      %p152 = por %p150, %p151
      %p153 = scmp.ne.s32.totalorder %s141, %s142
      %p154 = scmp.eq.s32.totalorder %s27, 1
      %p155 = por %p153, %p154
      %p157 = scmp.ne.s32.totalorder %s142, %s156
      %p158 = scmp.eq.s32.totalorder %s27, 0
      %p159 = por %p157, %p158
      %s161 = sadd.s32 %s160, 1
      %p164 = scmp.eq.s32.totalorder %s21, 1
      %p165 = scmp.ne.s32.totalorder %s160, %s162
      %p166 = scmp.eq.s32.totalorder %s21, 0
      %p167 = por %p165, %p166
      %p168 = scmp.ne.s32.totalorder %s160, %s162
      %p169 = scmp.eq.s32.totalorder %s26, 1
      %p170 = por %p168, %p169
      %p171 = scmp.ne.s32.totalorder %s162, %s163
      %p172 = scmp.eq.s32.totalorder %s26, 0
      %p173 = por %p171, %p172
      %p174 = scmp.ne.s32.totalorder %s162, %s163
      %p175 = scmp.eq.s32.totalorder %s27, 1
      %p176 = por %p174, %p175
      %p178 = scmp.ne.s32.totalorder %s163, %s177
      %p179 = scmp.eq.s32.totalorder %s27, 0
      %p180 = por %p178, %p179
      %s181 = ssub.s32 %s21, %s28
      %p182 = scmp.eq.s32.totalorder %s181, 0
      %s184 = sadd.s32 %s183, 1
      %s185 = scalar_select %p182, %s183, %s184
      %p188 = pneg %p182
      %p189 = scmp.eq.s32.totalorder %s21, 1
      %p190 = por %p188, %p189
      %p191 = scmp.ne.s32.totalorder %s183, %s186
      %p192 = scmp.eq.s32.totalorder %s21, 0
      %p193 = por %p191, %p192
      %p194 = scmp.ne.s32.totalorder %s183, %s186
      %p195 = scmp.eq.s32.totalorder %s26, 1
      %p196 = por %p194, %p195
      %p197 = scmp.ne.s32.totalorder %s186, %s187
      %p198 = scmp.eq.s32.totalorder %s26, 0
      %p199 = por %p197, %p198
      %p200 = scmp.ne.s32.totalorder %s186, %s187
      %p201 = scmp.eq.s32.totalorder %s27, 1
      %p202 = por %p200, %p201
      %p204 = scmp.ne.s32.totalorder %s187, %s203
      %p205 = scmp.eq.s32.totalorder %s27, 0
      %p206 = por %p204, %p205
      %p207 = scmp.le.s32.totalorder 1, %s21
      %p208 = scmp.lt.s32.totalorder %s21, 3
      %p209 = pnand %p207, %p208
      %p210 = pneg %p209
      // Predicated region
      $region9: #{tpu_custom_call.1} parent=5 // pred_check
        _
      $region10: #{tpu_custom_call.1} parent=5 // pred_check_branch
        %212 = sbr.rel (%p209) target = $region12
      $region11: #{tpu_custom_call.1} parent=5 // pred_region
        %s213 = ssub.s32 %s21, 1
        // Predicated region
        $region13: #{tpu_custom_call.1} parent=11 // pred_check
          %p214 = pneg %p68
        $region14: #{tpu_custom_call.1} parent=11 // pred_check_branch
          %216 = sbr.rel (%p214) target = $region16
        $region15: #{tpu_custom_call.1} parent=11 // pred_region
          %s218 = ssub.s32 2560, 2560
          %219 = vsyncadd [#allocation6], %s218
          %s220 = sshll.u32 [#allocation5], 4
          %s221 = int_to_ptr.vmem [resolvable:$true] %s220
          %226 = dma.hbm_to_vmem [thread:$0]  %s1, 2560, %s221, [#allocation6], 128, 128, 8
        $region16: #{tpu_custom_call.1} parent=11 // pred_fallthru
          _
        // Predicated region
        $region17: #{tpu_custom_call.1} parent=11 // pred_check
          %p227 = pneg %p89
        $region18: #{tpu_custom_call.1} parent=11 // pred_check_branch
          %229 = sbr.rel (%p227) target = $region20
        $region19: #{tpu_custom_call.1} parent=11 // pred_region
          _
        $region20: #{tpu_custom_call.1} parent=11 // pred_fallthru
          _
        // Predicated region
        $region21: #{tpu_custom_call.1} parent=11 // pred_check
          %p230 = pneg %p110
        $region22: #{tpu_custom_call.1} parent=11 // pred_check_branch
          %232 = sbr.rel (%p230) target = $region24
        $region23: #{tpu_custom_call.1} parent=11 // pred_region
          %s234 = ssub.s32 8192, 8192
          %235 = vsyncadd [#allocation6], %s234
          %s236 = sshll.u32 [#allocation7], 4
          %s237 = int_to_ptr.vmem [resolvable:$true] %s236
          %242 = dma.hbm_to_vmem [thread:$0]  %s3, 8192, %s237, [#allocation6], 256, 256, 16
        $region24: #{tpu_custom_call.1} parent=11 // pred_fallthru
          _
        // Predicated region
        $region25: #{tpu_custom_call.1} parent=11 // pred_check
          %p243 = pneg %p131
        $region26: #{tpu_custom_call.1} parent=11 // pred_check_branch
          %245 = sbr.rel (%p243) target = $region28
        $region27: #{tpu_custom_call.1} parent=11 // pred_region
          _
        $region28: #{tpu_custom_call.1} parent=11 // pred_fallthru
          _
        // Predicated region
        $region29: #{tpu_custom_call.1} parent=11 // pred_check
          %p246 = pneg %p152
        $region30: #{tpu_custom_call.1} parent=11 // pred_check_branch
          %248 = sbr.rel (%p246) target = $region32
        $region31: #{tpu_custom_call.1} parent=11 // pred_region
          %s250 = ssub.s32 8192, 8192
          %251 = vsyncadd [#allocation9], %s250
          %s252 = sshll.u32 [#allocation8], 4
          %s253 = int_to_ptr.vmem [resolvable:$true] %s252
          %258 = dma.hbm_to_vmem [thread:$0]  %s5, 8192, %s253, [#allocation9], 128, 128, 8
        $region32: #{tpu_custom_call.1} parent=11 // pred_fallthru
          _
        // Predicated region
        $region33: #{tpu_custom_call.1} parent=11 // pred_check
          %p259 = pneg %p173
        $region34: #{tpu_custom_call.1} parent=11 // pred_check_branch
          %261 = sbr.rel (%p259) target = $region36
        $region35: #{tpu_custom_call.1} parent=11 // pred_region
          _
        $region36: #{tpu_custom_call.1} parent=11 // pred_fallthru
          _
      $region12: #{tpu_custom_call.1} parent=5 // pred_fallthru
        _
      %p262 = scmp.lt.s32.totalorder %s21, 2
      // Predicated region
      $region37: #{tpu_custom_call.1} parent=5 // pred_check
        %p263 = pneg %p262
      $region38: #{tpu_custom_call.1} parent=5 // pred_check_branch
        %265 = sbr.rel (%p263) target = $region40
      $region39: #{tpu_custom_call.1} parent=5 // pred_region
        // Predicated region
        $region41: #{tpu_custom_call.1} parent=39 // pred_check
          %p266 = pneg %p41
        $region42: #{tpu_custom_call.1} parent=39 // pred_check_branch
          %268 = sbr.rel (%p266) target = $region44
        $region43: #{tpu_custom_call.1} parent=39 // pred_region
          %s269 = sand.u32 %s31, 1
          %s270 = scalar_lea.sflag [#allocation3], %s269
          %s271 = sand.u32 %s31, 1
          %s272 = smul.addr %s271, 16
          %s273 = scalar_lea.vmem [#allocation2], %s272
          %s274 = smul.u32 2, %s21
          %s276 = ssub.s32 256, 256
          %277 = vsyncadd %s270, %s276
          %s278 = smul.addr %s274, 2
          %s279 = smul.addr %s278, 64
          %s280 = scalar_lea.hbm %s0, %s279
          %s281 = sshll.u32 %s273, 4
          %s282 = int_to_ptr.vmem [resolvable:$true] %s281
          %287 = dma.hbm_to_vmem [thread:$0]  %s280, 256, %s282, %s270, 128, 128, 8
        $region44: #{tpu_custom_call.1} parent=39 // pred_fallthru
          _
      $region40: #{tpu_custom_call.1} parent=5 // pred_fallthru
        _
      %p288 = scmp.le.s32.totalorder 1, %s21
      %p289 = scmp.lt.s32.totalorder %s21, 3
      %p290 = pnand %p288, %p289
      %p291 = pneg %p290
      // Predicated region
      $region45: #{tpu_custom_call.1} parent=5 // pred_check
        _
      $region46: #{tpu_custom_call.1} parent=5 // pred_check_branch
        %293 = sbr.rel (%p290) target = $region48
      $region47: #{tpu_custom_call.1} parent=5 // pred_region
        %s294 = ssub.s32 %s21, 1
        %s295 = sand.u32 %s34, 1
        %s296 = scalar_lea.sflag [#allocation3], %s295
        %s297 = sand.u32 %s34, 1
        %s298 = smul.addr %s297, 16
        %s299 = scalar_lea.vmem [#allocation2], %s298
        // Predicated region
        $region49: #{tpu_custom_call.1} parent=47 // pred_check
          %p300 = pneg %p47
        $region50: #{tpu_custom_call.1} parent=47 // pred_check_branch
          %302 = sbr.rel (%p300) target = $region52
        $region51: #{tpu_custom_call.1} parent=47 // pred_region
          %303 = dma.done %s296, 256
        $region52: #{tpu_custom_call.1} parent=47 // pred_fallthru
          _
        // Predicated region
        $region53: #{tpu_custom_call.1} parent=47 // pred_check
          %p304 = pneg %p68
        $region54: #{tpu_custom_call.1} parent=47 // pred_check_branch
          %306 = sbr.rel (%p304) target = $region56
        $region55: #{tpu_custom_call.1} parent=47 // pred_region
          %307 = dma.done [#allocation6], 2560
        $region56: #{tpu_custom_call.1} parent=47 // pred_fallthru
          _
        // Predicated region
        $region57: #{tpu_custom_call.1} parent=47 // pred_check
          %p308 = pneg %p110
        $region58: #{tpu_custom_call.1} parent=47 // pred_check_branch
          %310 = sbr.rel (%p308) target = $region60
        $region59: #{tpu_custom_call.1} parent=47 // pred_region
          %311 = dma.done [#allocation6], 8192
        $region60: #{tpu_custom_call.1} parent=47 // pred_fallthru
          _
        // Predicated region
        $region61: #{tpu_custom_call.1} parent=47 // pred_check
          %p312 = pneg %p152
        $region62: #{tpu_custom_call.1} parent=47 // pred_check_branch
          %314 = sbr.rel (%p312) target = $region64
        $region63: #{tpu_custom_call.1} parent=47 // pred_region
          %315 = dma.done [#allocation9], 8192
        $region64: #{tpu_custom_call.1} parent=47 // pred_fallthru
          _
        %s316 = sand.u32 %s34, 1
        %s317 = scalar_lea.sflag [#allocation3], %s316
        %s318 = sand.u32 %s34, 1
        %s319 = smul.addr %s318, 16
        %s320 = scalar_lea.vmem [#allocation2], %s319
        %p321 = pneg %p47
        %p322 = pneg %p44
        %p323 = pneg %p68
        %p324 = pneg %p65
        %p325 = pneg %p89
        %p326 = pneg %p86
        %p327 = pneg %p110
        %p328 = pneg %p107
        %p329 = pneg %p131
        %p330 = pneg %p128
        %p331 = pneg %p152
        %p332 = pneg %p149
        %p333 = pneg %p173
        %p334 = pneg %p170
        %p335 = pneg %p199
        %p336 = pneg %p196
        %s337 = sand.u32 %s186, 1
        %s338 = scalar_lea.sflag [#allocation4], %s337
        %s339 = sand.u32 %s186, 1
        %s340 = smul.addr %s339, 32
        %s341 = scalar_lea.vmem [#allocation10], %s340
        %s342 = smul.u32 2, %s26
        %s343 = smul.u32 2, %s26
        %v345 = vld [vmem:[%s299] sm:$0xff]
        %v346 = vld [vmem:[%s299 + $0x8] sm:$0xff]
        %v347 = vld [vmem:[#allocation5] sm:$0xff]
        %v348 = vld [vmem:[#allocation5 + $0x8] sm:$0xff]
        %v349 = vld [vmem:[#allocation5 + $0x10] sm:$0xff]
        %v350 = vld [vmem:[#allocation5 + $0x18] sm:$0xff]
        %v351 = vld [vmem:[#allocation5 + $0x20] sm:$0xff]
        %v352 = vld [vmem:[#allocation5 + $0x28] sm:$0xff]
        %v353 = vld [vmem:[#allocation5 + $0x30] sm:$0xff]
        %v354 = vld [vmem:[#allocation5 + $0x38] sm:$0xff]
        %v355 = vld [vmem:[#allocation5 + $0x40] sm:$0xff]
        %v356 = vld [vmem:[#allocation5 + $0x48] sm:$0xff]
        %v357 = vld [vmem:[#allocation5 + $0x50] sm:$0xff]
        %v358 = vld [vmem:[#allocation5 + $0x58] sm:$0xff]
        %v359 = vld [vmem:[#allocation5 + $0x60] sm:$0xff]
        %v360 = vld [vmem:[#allocation5 + $0x68] sm:$0xff]
        %v361 = vld [vmem:[#allocation5 + $0x70] sm:$0xff]
        %v362 = vld [vmem:[#allocation5 + $0x78] sm:$0xff]
        %v363 = vld [vmem:[#allocation5 + $0x80] sm:$0xff]
        %v364 = vld [vmem:[#allocation5 + $0x88] sm:$0xff]
        %v365 = vld [vmem:[#allocation5 + $0x90] sm:$0xff]
        %v366 = vld [vmem:[#allocation5 + $0x98] sm:$0xff]
        %v367 = vld [vmem:[%s2] sm:$0x3]
        %v369 = vlaneseq
        %v370 = vshrl.u32 %v369, 7
        %v371 = vsub.s32 0, %v370
        %v372 = vrot.slane %v367, %v371
        %v373 = vlaneseq
        %v374 = vshrl.u32 %v373, 7
        %v375 = vsub.s32 1, %v374
        %v376 = vrot.slane %v367, %v375
        %v381 = vunpack.c.l.b16 %v345
        %v382 = vunpack.c.h.b16 %v345
        %v383 = vunpack.c.l.b16 %v346
        %v384 = vunpack.c.h.b16 %v346
        %v385 = vpack.c.b16 %v383, %v381
        %v386 = vpack.c.b16 %v384, %v382
        %v408 = vunpack.c.l.b16 %v347
        %v409 = vunpack.c.h.b16 %v347
        %v410 = vunpack.c.l.b16 %v348
        %v411 = vunpack.c.h.b16 %v348
        %v412 = vunpack.c.l.b16 %v349
        %v413 = vunpack.c.h.b16 %v349
        %v414 = vunpack.c.l.b16 %v350
        %v415 = vunpack.c.h.b16 %v350
        %v416 = vunpack.c.l.b16 %v351
        %v417 = vunpack.c.h.b16 %v351
        %v418 = vunpack.c.l.b16 %v352
        %v419 = vunpack.c.h.b16 %v352
        %v420 = vunpack.c.l.b16 %v353
        %v421 = vunpack.c.h.b16 %v353
        %v422 = vunpack.c.l.b16 %v354
        %v423 = vunpack.c.h.b16 %v354
        %v424 = vunpack.c.l.b16 %v355
        %v425 = vunpack.c.h.b16 %v355
        %v426 = vunpack.c.l.b16 %v356
        %v427 = vunpack.c.h.b16 %v356
        %v428 = vunpack.c.l.b16 %v357
        %v429 = vunpack.c.h.b16 %v357
        %v430 = vunpack.c.l.b16 %v358
        %v431 = vunpack.c.h.b16 %v358
        %v432 = vunpack.c.l.b16 %v359
        %v433 = vunpack.c.h.b16 %v359
        %v434 = vunpack.c.l.b16 %v360
        %v435 = vunpack.c.h.b16 %v360
        %v436 = vunpack.c.l.b16 %v361
        %v437 = vunpack.c.h.b16 %v361
        %v438 = vunpack.c.l.b16 %v362
        %v439 = vunpack.c.h.b16 %v362
        %v440 = vunpack.c.l.b16 %v363
        %v441 = vunpack.c.h.b16 %v363
        %v442 = vunpack.c.l.b16 %v364
        %v443 = vunpack.c.h.b16 %v364
        %v444 = vunpack.c.l.b16 %v365
        %v445 = vunpack.c.h.b16 %v365
        %v446 = vunpack.c.l.b16 %v366
        %v447 = vunpack.c.h.b16 %v366
        %v448 = vpack.c.b16 %v410, %v408
        %v449 = vpack.c.b16 %v411, %v409
        %v450 = vpack.c.b16 %v414, %v412
        %v451 = vpack.c.b16 %v415, %v413
        %v452 = vpack.c.b16 %v418, %v416
        %v453 = vpack.c.b16 %v419, %v417
        %v454 = vpack.c.b16 %v422, %v420
        %v455 = vpack.c.b16 %v423, %v421
        %v456 = vpack.c.b16 %v426, %v424
        %v457 = vpack.c.b16 %v427, %v425
        %v458 = vpack.c.b16 %v430, %v428
        %v459 = vpack.c.b16 %v431, %v429
        %v460 = vpack.c.b16 %v434, %v432
        %v461 = vpack.c.b16 %v435, %v433
        %v462 = vpack.c.b16 %v438, %v436
        %v463 = vpack.c.b16 %v439, %v437
        %v464 = vpack.c.b16 %v442, %v440
        %v465 = vpack.c.b16 %v443, %v441
        %v466 = vpack.c.b16 %v446, %v444
        %v467 = vpack.c.b16 %v447, %v445
        %vm488 = vcmask 261120
        %v490 = vsel %vm488, %v386, 0
        %492 = vmatprep.subr.bf16.mxu0 %v449
        %493 = vmatpush1.bf16.msra.mxu0 %v448
        %494 = vmatprep.subr.bf16.mxu0 %v451
        %495 = vmatpush1.bf16.msra.mxu0 %v450
        %496 = vmatprep.subr.bf16.mxu0 %v453
        %497 = vmatpush1.bf16.msra.mxu0 %v452
        %498 = vmatprep.subr.bf16.mxu0 %v455
        %499 = vmatpush1.bf16.msra.mxu0 %v454
        %500 = vmatprep.subr.bf16.mxu0 %v457
        %501 = vmatpush1.bf16.msra.mxu0 %v456
        %502 = vmatprep.subr.bf16.mxu0 %v459
        %503 = vmatpush1.bf16.msra.mxu0 %v458
        %504 = vmatprep.subr.bf16.mxu0 %v461
        %505 = vmatpush1.bf16.msra.mxu0 %v460
        %506 = vmatprep.subr.bf16.mxu0 %v463
        %507 = vmatpush1.bf16.msra.mxu0 %v462
        %508 = vmatprep.subr.bf16.mxu0 %v465
        %509 = vmatpush1.bf16.msra.mxu0 %v464
        %510 = vmatprep.subr.bf16.mxu0 %v467
        %511 = vmatpush1.bf16.msra.mxu0 %v466
        %512 = vmatprep.subr.bf16.mxu0 0
        %513 = vmatpush1.bf16.msra.mxu0 0
        %514 = vmatprep.subr.bf16.mxu0 0
        %515 = vmatpush1.bf16.msra.mxu0 0
        %516 = vmatprep.subr.bf16.mxu0 0
        %517 = vmatpush1.bf16.msra.mxu0 0
        %518 = vmatprep.subr.bf16.mxu0 0
        %519 = vmatpush1.bf16.msra.mxu0 0
        %520 = vmatprep.subr.bf16.mxu0 0
        %521 = vmatpush1.bf16.msra.mxu0 0
        %522 = vmatprep.subr.bf16.mxu0 0
        %523 = vmatpush1.bf16.msra.mxu0 0
        %524 = vmatprep.mubr.bf16.mxu0 %v490
        %525 = vmatmul.mubr.bf16.gmra.mrb[0].mxu0 %v385
        %v526 = vpop.f32.mrb[0].mxu0
        %v527 = vadd.f32 %v372, %v526
        %v528 = vpop.f32.mrb[0].mxu0
        %v529 = vadd.f32 %v376, %v528
        %v530 = vpop.f32.mrb[0].mxu0
        %v531 = vadd.f32 %v372, %v530
        %v532 = vpop.f32.mrb[0].mxu0
        %v533 = vadd.f32 %v376, %v532
        %534 = vdwg.mxu0
        %v535 = vmax.f32 %v527, 0.0
        %v536 = vmax.f32 %v529, 0.0
        %v537 = vmax.f32 %v531, 0.0
        %v538 = vmax.f32 %v533, 0.0
        %v539 = vpack.c.bf16 %v537, %v535
        %v540 = vpack.c.bf16 %v538, %v536
        %v541 = vld [vmem:[#allocation7] sm:$0xff]
        %v542 = vld [vmem:[#allocation7 + $0x8] sm:$0xff]
        %v543 = vld [vmem:[#allocation7 + $0x10] sm:$0xff]
        %v544 = vld [vmem:[#allocation7 + $0x18] sm:$0xff]
        %v545 = vld [vmem:[#allocation7 + $0x20] sm:$0xff]
        %v546 = vld [vmem:[#allocation7 + $0x28] sm:$0xff]
        %v547 = vld [vmem:[#allocation7 + $0x30] sm:$0xff]
        %v548 = vld [vmem:[#allocation7 + $0x38] sm:$0xff]
        %v549 = vld [vmem:[#allocation7 + $0x40] sm:$0xff]
        %v550 = vld [vmem:[#allocation7 + $0x48] sm:$0xff]
        %v551 = vld [vmem:[#allocation7 + $0x50] sm:$0xff]
        %v552 = vld [vmem:[#allocation7 + $0x58] sm:$0xff]
        %v553 = vld [vmem:[#allocation7 + $0x60] sm:$0xff]
        %v554 = vld [vmem:[#allocation7 + $0x68] sm:$0xff]
        %v555 = vld [vmem:[#allocation7 + $0x70] sm:$0xff]
        %v556 = vld [vmem:[#allocation7 + $0x78] sm:$0xff]
        %v557 = vld [vmem:[#allocation7 + $0x80] sm:$0xff]
        %v558 = vld [vmem:[#allocation7 + $0x88] sm:$0xff]
        %v559 = vld [vmem:[#allocation7 + $0x90] sm:$0xff]
        %v560 = vld [vmem:[#allocation7 + $0x98] sm:$0xff]
        %v561 = vld [vmem:[#allocation7 + $0xa0] sm:$0xff]
        %v562 = vld [vmem:[#allocation7 + $0xa8] sm:$0xff]
        %v563 = vld [vmem:[#allocation7 + $0xb0] sm:$0xff]
        %v564 = vld [vmem:[#allocation7 + $0xb8] sm:$0xff]
        %v565 = vld [vmem:[#allocation7 + $0xc0] sm:$0xff]
        %v566 = vld [vmem:[#allocation7 + $0xc8] sm:$0xff]
        %v567 = vld [vmem:[#allocation7 + $0xd0] sm:$0xff]
        %v568 = vld [vmem:[#allocation7 + $0xd8] sm:$0xff]
        %v569 = vld [vmem:[#allocation7 + $0xe0] sm:$0xff]
        %v570 = vld [vmem:[#allocation7 + $0xe8] sm:$0xff]
        %v571 = vld [vmem:[#allocation7 + $0xf0] sm:$0xff]
        %v572 = vld [vmem:[#allocation7 + $0xf8] sm:$0xff]
        %v573 = vld [vmem:[#allocation7 + $0x100] sm:$0xff]
        %v574 = vld [vmem:[#allocation7 + $0x108] sm:$0xff]
        %v575 = vld [vmem:[#allocation7 + $0x110] sm:$0xff]
        %v576 = vld [vmem:[#allocation7 + $0x118] sm:$0xff]
        %v577 = vld [vmem:[#allocation7 + $0x120] sm:$0xff]
        %v578 = vld [vmem:[#allocation7 + $0x128] sm:$0xff]
        %v579 = vld [vmem:[#allocation7 + $0x130] sm:$0xff]
        %v580 = vld [vmem:[#allocation7 + $0x138] sm:$0xff]
        %v581 = vld [vmem:[#allocation7 + $0x140] sm:$0xff]
        %v582 = vld [vmem:[#allocation7 + $0x148] sm:$0xff]
        %v583 = vld [vmem:[#allocation7 + $0x150] sm:$0xff]
        %v584 = vld [vmem:[#allocation7 + $0x158] sm:$0xff]
        %v585 = vld [vmem:[#allocation7 + $0x160] sm:$0xff]
        %v586 = vld [vmem:[#allocation7 + $0x168] sm:$0xff]
        %v587 = vld [vmem:[#allocation7 + $0x170] sm:$0xff]
        %v588 = vld [vmem:[#allocation7 + $0x178] sm:$0xff]
        %v589 = vld [vmem:[#allocation7 + $0x180] sm:$0xff]
        %v590 = vld [vmem:[#allocation7 + $0x188] sm:$0xff]
        %v591 = vld [vmem:[#allocation7 + $0x190] sm:$0xff]
        %v592 = vld [vmem:[#allocation7 + $0x198] sm:$0xff]
        %v593 = vld [vmem:[#allocation7 + $0x1a0] sm:$0xff]
        %v594 = vld [vmem:[#allocation7 + $0x1a8] sm:$0xff]
        %v595 = vld [vmem:[#allocation7 + $0x1b0] sm:$0xff]
        %v596 = vld [vmem:[#allocation7 + $0x1b8] sm:$0xff]
        %v597 = vld [vmem:[#allocation7 + $0x1c0] sm:$0xff]
        %v598 = vld [vmem:[#allocation7 + $0x1c8] sm:$0xff]
        %v599 = vld [vmem:[#allocation7 + $0x1d0] sm:$0xff]
        %v600 = vld [vmem:[#allocation7 + $0x1d8] sm:$0xff]
        %v601 = vld [vmem:[#allocation7 + $0x1e0] sm:$0xff]
        %v602 = vld [vmem:[#allocation7 + $0x1e8] sm:$0xff]
        %v603 = vld [vmem:[#allocation7 + $0x1f0] sm:$0xff]
        %v604 = vld [vmem:[#allocation7 + $0x1f8] sm:$0xff]
        %v605 = vld [vmem:[%s4] sm:$0xf]
        %v607 = vlaneseq
        %v608 = vshrl.u32 %v607, 7
        %v609 = vsub.s32 0, %v608
        %v610 = vrot.slane %v605, %v609
        %v611 = vlaneseq
        %v612 = vshrl.u32 %v611, 7
        %v613 = vsub.s32 1, %v612
        %v614 = vrot.slane %v605, %v613
        %v615 = vlaneseq
        %v616 = vshrl.u32 %v615, 7
        %v617 = vsub.s32 2, %v616
        %v618 = vrot.slane %v605, %v617
        %v619 = vlaneseq
        %v620 = vshrl.u32 %v619, 7
        %v621 = vsub.s32 3, %v620
        %v622 = vrot.slane %v605, %v621
        %v691 = vunpack.c.l.b16 %v541
        %v692 = vunpack.c.h.b16 %v541
        %v693 = vunpack.c.l.b16 %v542
        %v694 = vunpack.c.h.b16 %v542
        %v695 = vunpack.c.l.b16 %v543
        %v696 = vunpack.c.h.b16 %v543
        %v697 = vunpack.c.l.b16 %v544
        %v698 = vunpack.c.h.b16 %v544
        %v699 = vunpack.c.l.b16 %v545
        %v700 = vunpack.c.h.b16 %v545
        %v701 = vunpack.c.l.b16 %v546
        %v702 = vunpack.c.h.b16 %v546
        %v703 = vunpack.c.l.b16 %v547
        %v704 = vunpack.c.h.b16 %v547
        %v705 = vunpack.c.l.b16 %v548
        %v706 = vunpack.c.h.b16 %v548
        %v707 = vunpack.c.l.b16 %v549
        %v708 = vunpack.c.h.b16 %v549
        %v709 = vunpack.c.l.b16 %v550
        %v710 = vunpack.c.h.b16 %v550
        %v711 = vunpack.c.l.b16 %v551
        %v712 = vunpack.c.h.b16 %v551
        %v713 = vunpack.c.l.b16 %v552
        %v714 = vunpack.c.h.b16 %v552
        %v715 = vunpack.c.l.b16 %v553
        %v716 = vunpack.c.h.b16 %v553
        %v717 = vunpack.c.l.b16 %v554
        %v718 = vunpack.c.h.b16 %v554
        %v719 = vunpack.c.l.b16 %v555
        %v720 = vunpack.c.h.b16 %v555
        %v721 = vunpack.c.l.b16 %v556
        %v722 = vunpack.c.h.b16 %v556
        %v723 = vunpack.c.l.b16 %v557
        %v724 = vunpack.c.h.b16 %v557
        %v725 = vunpack.c.l.b16 %v558
        %v726 = vunpack.c.h.b16 %v558
        %v727 = vunpack.c.l.b16 %v559
        %v728 = vunpack.c.h.b16 %v559
        %v729 = vunpack.c.l.b16 %v560
        %v730 = vunpack.c.h.b16 %v560
        %v731 = vunpack.c.l.b16 %v561
        %v732 = vunpack.c.h.b16 %v561
        %v733 = vunpack.c.l.b16 %v562
        %v734 = vunpack.c.h.b16 %v562
        %v735 = vunpack.c.l.b16 %v563
        %v736 = vunpack.c.h.b16 %v563
        %v737 = vunpack.c.l.b16 %v564
        %v738 = vunpack.c.h.b16 %v564
        %v739 = vunpack.c.l.b16 %v565
        %v740 = vunpack.c.h.b16 %v565
        %v741 = vunpack.c.l.b16 %v566
        %v742 = vunpack.c.h.b16 %v566
        %v743 = vunpack.c.l.b16 %v567
        %v744 = vunpack.c.h.b16 %v567
        %v745 = vunpack.c.l.b16 %v568
        %v746 = vunpack.c.h.b16 %v568
        %v747 = vunpack.c.l.b16 %v569
        %v748 = vunpack.c.h.b16 %v569
        %v749 = vunpack.c.l.b16 %v570
        %v750 = vunpack.c.h.b16 %v570
        %v751 = vunpack.c.l.b16 %v571
        %v752 = vunpack.c.h.b16 %v571
        %v753 = vunpack.c.l.b16 %v572
        %v754 = vunpack.c.h.b16 %v572
        %v755 = vunpack.c.l.b16 %v573
        %v756 = vunpack.c.h.b16 %v573
        %v757 = vunpack.c.l.b16 %v574
        %v758 = vunpack.c.h.b16 %v574
        %v759 = vunpack.c.l.b16 %v575
        %v760 = vunpack.c.h.b16 %v575
        %v761 = vunpack.c.l.b16 %v576
        %v762 = vunpack.c.h.b16 %v576
        %v763 = vunpack.c.l.b16 %v577
        %v764 = vunpack.c.h.b16 %v577
        %v765 = vunpack.c.l.b16 %v578
        %v766 = vunpack.c.h.b16 %v578
        %v767 = vunpack.c.l.b16 %v579
        %v768 = vunpack.c.h.b16 %v579
        %v769 = vunpack.c.l.b16 %v580
        %v770 = vunpack.c.h.b16 %v580
        %v771 = vunpack.c.l.b16 %v581
        %v772 = vunpack.c.h.b16 %v581
        %v773 = vunpack.c.l.b16 %v582
        %v774 = vunpack.c.h.b16 %v582
        %v775 = vunpack.c.l.b16 %v583
        %v776 = vunpack.c.h.b16 %v583
        %v777 = vunpack.c.l.b16 %v584
        %v778 = vunpack.c.h.b16 %v584
        %v779 = vunpack.c.l.b16 %v585
        %v780 = vunpack.c.h.b16 %v585
        %v781 = vunpack.c.l.b16 %v586
        %v782 = vunpack.c.h.b16 %v586
        %v783 = vunpack.c.l.b16 %v587
        %v784 = vunpack.c.h.b16 %v587
        %v785 = vunpack.c.l.b16 %v588
        %v786 = vunpack.c.h.b16 %v588
        %v787 = vunpack.c.l.b16 %v589
        %v788 = vunpack.c.h.b16 %v589
        %v789 = vunpack.c.l.b16 %v590
        %v790 = vunpack.c.h.b16 %v590
        %v791 = vunpack.c.l.b16 %v591
        %v792 = vunpack.c.h.b16 %v591
        %v793 = vunpack.c.l.b16 %v592
        %v794 = vunpack.c.h.b16 %v592
        %v795 = vunpack.c.l.b16 %v593
        %v796 = vunpack.c.h.b16 %v593
        %v797 = vunpack.c.l.b16 %v594
        %v798 = vunpack.c.h.b16 %v594
        %v799 = vunpack.c.l.b16 %v595
        %v800 = vunpack.c.h.b16 %v595
        %v801 = vunpack.c.l.b16 %v596
        %v802 = vunpack.c.h.b16 %v596
        %v803 = vunpack.c.l.b16 %v597
        %v804 = vunpack.c.h.b16 %v597
        %v805 = vunpack.c.l.b16 %v598
        %v806 = vunpack.c.h.b16 %v598
        %v807 = vunpack.c.l.b16 %v599
        %v808 = vunpack.c.h.b16 %v599
        %v809 = vunpack.c.l.b16 %v600
        %v810 = vunpack.c.h.b16 %v600
        %v811 = vunpack.c.l.b16 %v601
        %v812 = vunpack.c.h.b16 %v601
        %v813 = vunpack.c.l.b16 %v602
        %v814 = vunpack.c.h.b16 %v602
        %v815 = vunpack.c.l.b16 %v603
        %v816 = vunpack.c.h.b16 %v603
        %v817 = vunpack.c.l.b16 %v604
        %v818 = vunpack.c.h.b16 %v604
        %v819 = vpack.c.b16 %v695, %v691
        %v820 = vpack.c.b16 %v696, %v692
        %v821 = vpack.c.b16 %v697, %v693
        %v822 = vpack.c.b16 %v698, %v694
        %v823 = vpack.c.b16 %v703, %v699
        %v824 = vpack.c.b16 %v704, %v700
        %v825 = vpack.c.b16 %v705, %v701
        %v826 = vpack.c.b16 %v706, %v702
        %v827 = vpack.c.b16 %v711, %v707
        %v828 = vpack.c.b16 %v712, %v708
        %v829 = vpack.c.b16 %v713, %v709
        %v830 = vpack.c.b16 %v714, %v710
        %v831 = vpack.c.b16 %v719, %v715
        %v832 = vpack.c.b16 %v720, %v716
        %v833 = vpack.c.b16 %v721, %v717
        %v834 = vpack.c.b16 %v722, %v718
        %v835 = vpack.c.b16 %v727, %v723
        %v836 = vpack.c.b16 %v728, %v724
        %v837 = vpack.c.b16 %v729, %v725
        %v838 = vpack.c.b16 %v730, %v726
        %v839 = vpack.c.b16 %v735, %v731
        %v840 = vpack.c.b16 %v736, %v732
        %v841 = vpack.c.b16 %v737, %v733
        %v842 = vpack.c.b16 %v738, %v734
        %v843 = vpack.c.b16 %v743, %v739
        %v844 = vpack.c.b16 %v744, %v740
        %v845 = vpack.c.b16 %v745, %v741
        %v846 = vpack.c.b16 %v746, %v742
        %v847 = vpack.c.b16 %v751, %v747
        %v848 = vpack.c.b16 %v752, %v748
        %v849 = vpack.c.b16 %v753, %v749
        %v850 = vpack.c.b16 %v754, %v750
        %v851 = vpack.c.b16 %v759, %v755
        %v852 = vpack.c.b16 %v760, %v756
        %v853 = vpack.c.b16 %v761, %v757
        %v854 = vpack.c.b16 %v762, %v758
        %v855 = vpack.c.b16 %v767, %v763
        %v856 = vpack.c.b16 %v768, %v764
        %v857 = vpack.c.b16 %v769, %v765
        %v858 = vpack.c.b16 %v770, %v766
        %v859 = vpack.c.b16 %v775, %v771
        %v860 = vpack.c.b16 %v776, %v772
        %v861 = vpack.c.b16 %v777, %v773
        %v862 = vpack.c.b16 %v778, %v774
        %v863 = vpack.c.b16 %v783, %v779
        %v864 = vpack.c.b16 %v784, %v780
        %v865 = vpack.c.b16 %v785, %v781
        %v866 = vpack.c.b16 %v786, %v782
        %v867 = vpack.c.b16 %v791, %v787
        %v868 = vpack.c.b16 %v792, %v788
        %v869 = vpack.c.b16 %v793, %v789
        %v870 = vpack.c.b16 %v794, %v790
        %v871 = vpack.c.b16 %v799, %v795
        %v872 = vpack.c.b16 %v800, %v796
        %v873 = vpack.c.b16 %v801, %v797
        %v874 = vpack.c.b16 %v802, %v798
        %v875 = vpack.c.b16 %v807, %v803
        %v876 = vpack.c.b16 %v808, %v804
        %v877 = vpack.c.b16 %v809, %v805
        %v878 = vpack.c.b16 %v810, %v806
        %v879 = vpack.c.b16 %v815, %v811
        %v880 = vpack.c.b16 %v816, %v812
        %v881 = vpack.c.b16 %v817, %v813
        %v882 = vpack.c.b16 %v818, %v814
        %947 = vmatprep.subr.bf16.mxu0 %v820
        %948 = vmatpush1.bf16.msra.mxu0 %v819
        %949 = vmatprep.subr.bf16.mxu0 %v824
        %950 = vmatpush1.bf16.msra.mxu0 %v823
        %951 = vmatprep.subr.bf16.mxu0 %v828
        %952 = vmatpush1.bf16.msra.mxu0 %v827
        %953 = vmatprep.subr.bf16.mxu0 %v832
        %954 = vmatpush1.bf16.msra.mxu0 %v831
        %955 = vmatprep.subr.bf16.mxu0 %v836
        %956 = vmatpush1.bf16.msra.mxu0 %v835
        %957 = vmatprep.subr.bf16.mxu0 %v840
        %958 = vmatpush1.bf16.msra.mxu0 %v839
        %959 = vmatprep.subr.bf16.mxu0 %v844
        %960 = vmatpush1.bf16.msra.mxu0 %v843
        %961 = vmatprep.subr.bf16.mxu0 %v848
        %962 = vmatpush1.bf16.msra.mxu0 %v847
        %963 = vmatprep.subr.bf16.mxu0 %v852
        %964 = vmatpush1.bf16.msra.mxu0 %v851
        %965 = vmatprep.subr.bf16.mxu0 %v856
        %966 = vmatpush1.bf16.msra.mxu0 %v855
        %967 = vmatprep.subr.bf16.mxu0 %v860
        %968 = vmatpush1.bf16.msra.mxu0 %v859
        %969 = vmatprep.subr.bf16.mxu0 %v864
        %970 = vmatpush1.bf16.msra.mxu0 %v863
        %971 = vmatprep.subr.bf16.mxu0 %v868
        %972 = vmatpush1.bf16.msra.mxu0 %v867
        %973 = vmatprep.subr.bf16.mxu0 %v872
        %974 = vmatpush1.bf16.msra.mxu0 %v871
        %975 = vmatprep.subr.bf16.mxu0 %v876
        %976 = vmatpush1.bf16.msra.mxu0 %v875
        %977 = vmatprep.subr.bf16.mxu0 %v880
        %978 = vmatpush1.bf16.msra.mxu0 %v879
        %979 = vmatprep.mubr.bf16.mxu0 %v540
        %980 = vmatmul.mubr.bf16.gmra.mrb[0].mxu0 %v539
        %v981 = vpop.f32.mrb[0].mxu0
        %v982 = vadd.f32 %v610, %v981
        %v983 = vpop.f32.mrb[0].mxu0
        %v984 = vadd.f32 %v614, %v983
        %v985 = vpop.f32.mrb[0].mxu0
        %v986 = vadd.f32 %v610, %v985
        %v987 = vpop.f32.mrb[0].mxu0
        %v988 = vadd.f32 %v614, %v987
        %989 = vdwg.mxu0
        %990 = vmatprep.subr.bf16.mxu0 %v822
        %991 = vmatpush1.bf16.msra.mxu0 %v821
        %992 = vmatprep.subr.bf16.mxu0 %v826
        %993 = vmatpush1.bf16.msra.mxu0 %v825
        %994 = vmatprep.subr.bf16.mxu0 %v830
        %995 = vmatpush1.bf16.msra.mxu0 %v829
        %996 = vmatprep.subr.bf16.mxu0 %v834
        %997 = vmatpush1.bf16.msra.mxu0 %v833
        %998 = vmatprep.subr.bf16.mxu0 %v838
        %999 = vmatpush1.bf16.msra.mxu0 %v837
        %1000 = vmatprep.subr.bf16.mxu0 %v842
        %1001 = vmatpush1.bf16.msra.mxu0 %v841
        %1002 = vmatprep.subr.bf16.mxu0 %v846
        %1003 = vmatpush1.bf16.msra.mxu0 %v845
        %1004 = vmatprep.subr.bf16.mxu0 %v850
        %1005 = vmatpush1.bf16.msra.mxu0 %v849
        %1006 = vmatprep.subr.bf16.mxu0 %v854
        %1007 = vmatpush1.bf16.msra.mxu0 %v853
        %1008 = vmatprep.subr.bf16.mxu0 %v858
        %1009 = vmatpush1.bf16.msra.mxu0 %v857
        %1010 = vmatprep.subr.bf16.mxu0 %v862
        %1011 = vmatpush1.bf16.msra.mxu0 %v861
        %1012 = vmatprep.subr.bf16.mxu0 %v866
        %1013 = vmatpush1.bf16.msra.mxu0 %v865
        %1014 = vmatprep.subr.bf16.mxu0 %v870
        %1015 = vmatpush1.bf16.msra.mxu0 %v869
        %1016 = vmatprep.subr.bf16.mxu0 %v874
        %1017 = vmatpush1.bf16.msra.mxu0 %v873
        %1018 = vmatprep.subr.bf16.mxu0 %v878
        %1019 = vmatpush1.bf16.msra.mxu0 %v877
        %1020 = vmatprep.subr.bf16.mxu0 %v882
        %1021 = vmatpush1.bf16.msra.mxu0 %v881
        %1022 = vmatprep.mubr.bf16.mxu0 %v540
        %1023 = vmatmul.mubr.bf16.gmra.mrb[0].mxu0 %v539
        %v1024 = vpop.f32.mrb[0].mxu0
        %v1025 = vadd.f32 %v618, %v1024
        %v1026 = vpop.f32.mrb[0].mxu0
        %v1027 = vadd.f32 %v622, %v1026
        %v1028 = vpop.f32.mrb[0].mxu0
        %v1029 = vadd.f32 %v618, %v1028
        %v1030 = vpop.f32.mrb[0].mxu0
        %v1031 = vadd.f32 %v622, %v1030
        %1032 = vdwg.mxu0
        %v1033 = vmax.f32 %v982, 0.0
        %v1034 = vmax.f32 %v984, 0.0
        %v1035 = vmax.f32 %v1025, 0.0
        %v1036 = vmax.f32 %v1027, 0.0
        %v1037 = vmax.f32 %v986, 0.0
        %v1038 = vmax.f32 %v988, 0.0
        %v1039 = vmax.f32 %v1029, 0.0
        %v1040 = vmax.f32 %v1031, 0.0
        %v1041 = vpack.c.bf16 %v1037, %v1033
        %v1042 = vpack.c.bf16 %v1038, %v1034
        %v1043 = vpack.c.bf16 %v1039, %v1035
        %v1044 = vpack.c.bf16 %v1040, %v1036
        %v1045 = vld [vmem:[#allocation8] sm:$0xff]
        %v1046 = vld [vmem:[#allocation8 + $0x8] sm:$0xff]
        %v1047 = vld [vmem:[#allocation8 + $0x10] sm:$0xff]
        %v1048 = vld [vmem:[#allocation8 + $0x18] sm:$0xff]
        %v1049 = vld [vmem:[#allocation8 + $0x20] sm:$0xff]
        %v1050 = vld [vmem:[#allocation8 + $0x28] sm:$0xff]
        %v1051 = vld [vmem:[#allocation8 + $0x30] sm:$0xff]
        %v1052 = vld [vmem:[#allocation8 + $0x38] sm:$0xff]
        %v1053 = vld [vmem:[#allocation8 + $0x40] sm:$0xff]
        %v1054 = vld [vmem:[#allocation8 + $0x48] sm:$0xff]
        %v1055 = vld [vmem:[#allocation8 + $0x50] sm:$0xff]
        %v1056 = vld [vmem:[#allocation8 + $0x58] sm:$0xff]
        %v1057 = vld [vmem:[#allocation8 + $0x60] sm:$0xff]
        %v1058 = vld [vmem:[#allocation8 + $0x68] sm:$0xff]
        %v1059 = vld [vmem:[#allocation8 + $0x70] sm:$0xff]
        %v1060 = vld [vmem:[#allocation8 + $0x78] sm:$0xff]
        %v1061 = vld [vmem:[#allocation8 + $0x80] sm:$0xff]
        %v1062 = vld [vmem:[#allocation8 + $0x88] sm:$0xff]
        %v1063 = vld [vmem:[#allocation8 + $0x90] sm:$0xff]
        %v1064 = vld [vmem:[#allocation8 + $0x98] sm:$0xff]
        %v1065 = vld [vmem:[#allocation8 + $0xa0] sm:$0xff]
        %v1066 = vld [vmem:[#allocation8 + $0xa8] sm:$0xff]
        %v1067 = vld [vmem:[#allocation8 + $0xb0] sm:$0xff]
        %v1068 = vld [vmem:[#allocation8 + $0xb8] sm:$0xff]
        %v1069 = vld [vmem:[#allocation8 + $0xc0] sm:$0xff]
        %v1070 = vld [vmem:[#allocation8 + $0xc8] sm:$0xff]
        %v1071 = vld [vmem:[#allocation8 + $0xd0] sm:$0xff]
        %v1072 = vld [vmem:[#allocation8 + $0xd8] sm:$0xff]
        %v1073 = vld [vmem:[#allocation8 + $0xe0] sm:$0xff]
        %v1074 = vld [vmem:[#allocation8 + $0xe8] sm:$0xff]
        %v1075 = vld [vmem:[#allocation8 + $0xf0] sm:$0xff]
        %v1076 = vld [vmem:[#allocation8 + $0xf8] sm:$0xff]
        %v1077 = vld [vmem:[#allocation8 + $0x100] sm:$0xff]
        %v1078 = vld [vmem:[#allocation8 + $0x108] sm:$0xff]
        %v1079 = vld [vmem:[#allocation8 + $0x110] sm:$0xff]
        %v1080 = vld [vmem:[#allocation8 + $0x118] sm:$0xff]
        %v1081 = vld [vmem:[#allocation8 + $0x120] sm:$0xff]
        %v1082 = vld [vmem:[#allocation8 + $0x128] sm:$0xff]
        %v1083 = vld [vmem:[#allocation8 + $0x130] sm:$0xff]
        %v1084 = vld [vmem:[#allocation8 + $0x138] sm:$0xff]
        %v1085 = vld [vmem:[#allocation8 + $0x140] sm:$0xff]
        %v1086 = vld [vmem:[#allocation8 + $0x148] sm:$0xff]
        %v1087 = vld [vmem:[#allocation8 + $0x150] sm:$0xff]
        %v1088 = vld [vmem:[#allocation8 + $0x158] sm:$0xff]
        %v1089 = vld [vmem:[#allocation8 + $0x160] sm:$0xff]
        %v1090 = vld [vmem:[#allocation8 + $0x168] sm:$0xff]
        %v1091 = vld [vmem:[#allocation8 + $0x170] sm:$0xff]
        %v1092 = vld [vmem:[#allocation8 + $0x178] sm:$0xff]
        %v1093 = vld [vmem:[#allocation8 + $0x180] sm:$0xff]
        %v1094 = vld [vmem:[#allocation8 + $0x188] sm:$0xff]
        %v1095 = vld [vmem:[#allocation8 + $0x190] sm:$0xff]
        %v1096 = vld [vmem:[#allocation8 + $0x198] sm:$0xff]
        %v1097 = vld [vmem:[#allocation8 + $0x1a0] sm:$0xff]
        %v1098 = vld [vmem:[#allocation8 + $0x1a8] sm:$0xff]
        %v1099 = vld [vmem:[#allocation8 + $0x1b0] sm:$0xff]
        %v1100 = vld [vmem:[#allocation8 + $0x1b8] sm:$0xff]
        %v1101 = vld [vmem:[#allocation8 + $0x1c0] sm:$0xff]
        %v1102 = vld [vmem:[#allocation8 + $0x1c8] sm:$0xff]
        %v1103 = vld [vmem:[#allocation8 + $0x1d0] sm:$0xff]
        %v1104 = vld [vmem:[#allocation8 + $0x1d8] sm:$0xff]
        %v1105 = vld [vmem:[#allocation8 + $0x1e0] sm:$0xff]
        %v1106 = vld [vmem:[#allocation8 + $0x1e8] sm:$0xff]
        %v1107 = vld [vmem:[#allocation8 + $0x1f0] sm:$0xff]
        %v1108 = vld [vmem:[#allocation8 + $0x1f8] sm:$0xff]
        %v1109 = vld [vmem:[%s6] sm:$0x3]
        %v1111 = vlaneseq
        %v1112 = vshrl.u32 %v1111, 7
        %v1113 = vsub.s32 0, %v1112
        %v1114 = vrot.slane %v1109, %v1113
        %v1115 = vlaneseq
        %v1116 = vshrl.u32 %v1115, 7
        %v1117 = vsub.s32 1, %v1116
        %v1118 = vrot.slane %v1109, %v1117
        %v1185 = vunpack.c.l.b16 %v1045
        %v1186 = vunpack.c.h.b16 %v1045
        %v1187 = vunpack.c.l.b16 %v1046
        %v1188 = vunpack.c.h.b16 %v1046
        %v1189 = vunpack.c.l.b16 %v1047
        %v1190 = vunpack.c.h.b16 %v1047
        %v1191 = vunpack.c.l.b16 %v1048
        %v1192 = vunpack.c.h.b16 %v1048
        %v1193 = vunpack.c.l.b16 %v1049
        %v1194 = vunpack.c.h.b16 %v1049
        %v1195 = vunpack.c.l.b16 %v1050
        %v1196 = vunpack.c.h.b16 %v1050
        %v1197 = vunpack.c.l.b16 %v1051
        %v1198 = vunpack.c.h.b16 %v1051
        %v1199 = vunpack.c.l.b16 %v1052
        %v1200 = vunpack.c.h.b16 %v1052
        %v1201 = vunpack.c.l.b16 %v1053
        %v1202 = vunpack.c.h.b16 %v1053
        %v1203 = vunpack.c.l.b16 %v1054
        %v1204 = vunpack.c.h.b16 %v1054
        %v1205 = vunpack.c.l.b16 %v1055
        %v1206 = vunpack.c.h.b16 %v1055
        %v1207 = vunpack.c.l.b16 %v1056
        %v1208 = vunpack.c.h.b16 %v1056
        %v1209 = vunpack.c.l.b16 %v1057
        %v1210 = vunpack.c.h.b16 %v1057
        %v1211 = vunpack.c.l.b16 %v1058
        %v1212 = vunpack.c.h.b16 %v1058
        %v1213 = vunpack.c.l.b16 %v1059
        %v1214 = vunpack.c.h.b16 %v1059
        %v1215 = vunpack.c.l.b16 %v1060
        %v1216 = vunpack.c.h.b16 %v1060
        %v1217 = vunpack.c.l.b16 %v1061
        %v1218 = vunpack.c.h.b16 %v1061
        %v1219 = vunpack.c.l.b16 %v1062
        %v1220 = vunpack.c.h.b16 %v1062
        %v1221 = vunpack.c.l.b16 %v1063
        %v1222 = vunpack.c.h.b16 %v1063
        %v1223 = vunpack.c.l.b16 %v1064
        %v1224 = vunpack.c.h.b16 %v1064
        %v1225 = vunpack.c.l.b16 %v1065
        %v1226 = vunpack.c.h.b16 %v1065
        %v1227 = vunpack.c.l.b16 %v1066
        %v1228 = vunpack.c.h.b16 %v1066
        %v1229 = vunpack.c.l.b16 %v1067
        %v1230 = vunpack.c.h.b16 %v1067
        %v1231 = vunpack.c.l.b16 %v1068
        %v1232 = vunpack.c.h.b16 %v1068
        %v1233 = vunpack.c.l.b16 %v1069
        %v1234 = vunpack.c.h.b16 %v1069
        %v1235 = vunpack.c.l.b16 %v1070
        %v1236 = vunpack.c.h.b16 %v1070
        %v1237 = vunpack.c.l.b16 %v1071
        %v1238 = vunpack.c.h.b16 %v1071
        %v1239 = vunpack.c.l.b16 %v1072
        %v1240 = vunpack.c.h.b16 %v1072
        %v1241 = vunpack.c.l.b16 %v1073
        %v1242 = vunpack.c.h.b16 %v1073
        %v1243 = vunpack.c.l.b16 %v1074
        %v1244 = vunpack.c.h.b16 %v1074
        %v1245 = vunpack.c.l.b16 %v1075
        %v1246 = vunpack.c.h.b16 %v1075
        %v1247 = vunpack.c.l.b16 %v1076
        %v1248 = vunpack.c.h.b16 %v1076
        %v1249 = vunpack.c.l.b16 %v1077
        %v1250 = vunpack.c.h.b16 %v1077
        %v1251 = vunpack.c.l.b16 %v1078
        %v1252 = vunpack.c.h.b16 %v1078
        %v1253 = vunpack.c.l.b16 %v1079
        %v1254 = vunpack.c.h.b16 %v1079
        %v1255 = vunpack.c.l.b16 %v1080
        %v1256 = vunpack.c.h.b16 %v1080
        %v1257 = vunpack.c.l.b16 %v1081
        %v1258 = vunpack.c.h.b16 %v1081
        %v1259 = vunpack.c.l.b16 %v1082
        %v1260 = vunpack.c.h.b16 %v1082
        %v1261 = vunpack.c.l.b16 %v1083
        %v1262 = vunpack.c.h.b16 %v1083
        %v1263 = vunpack.c.l.b16 %v1084
        %v1264 = vunpack.c.h.b16 %v1084
        %v1265 = vunpack.c.l.b16 %v1085
        %v1266 = vunpack.c.h.b16 %v1085
        %v1267 = vunpack.c.l.b16 %v1086
        %v1268 = vunpack.c.h.b16 %v1086
        %v1269 = vunpack.c.l.b16 %v1087
        %v1270 = vunpack.c.h.b16 %v1087
        %v1271 = vunpack.c.l.b16 %v1088
        %v1272 = vunpack.c.h.b16 %v1088
        %v1273 = vunpack.c.l.b16 %v1089
        %v1274 = vunpack.c.h.b16 %v1089
        %v1275 = vunpack.c.l.b16 %v1090
        %v1276 = vunpack.c.h.b16 %v1090
        %v1277 = vunpack.c.l.b16 %v1091
        %v1278 = vunpack.c.h.b16 %v1091
        %v1279 = vunpack.c.l.b16 %v1092
        %v1280 = vunpack.c.h.b16 %v1092
        %v1281 = vunpack.c.l.b16 %v1093
        %v1282 = vunpack.c.h.b16 %v1093
        %v1283 = vunpack.c.l.b16 %v1094
        %v1284 = vunpack.c.h.b16 %v1094
        %v1285 = vunpack.c.l.b16 %v1095
        %v1286 = vunpack.c.h.b16 %v1095
        %v1287 = vunpack.c.l.b16 %v1096
        %v1288 = vunpack.c.h.b16 %v1096
        %v1289 = vunpack.c.l.b16 %v1097
        %v1290 = vunpack.c.h.b16 %v1097
        %v1291 = vunpack.c.l.b16 %v1098
        %v1292 = vunpack.c.h.b16 %v1098
        %v1293 = vunpack.c.l.b16 %v1099
        %v1294 = vunpack.c.h.b16 %v1099
        %v1295 = vunpack.c.l.b16 %v1100
        %v1296 = vunpack.c.h.b16 %v1100
        %v1297 = vunpack.c.l.b16 %v1101
        %v1298 = vunpack.c.h.b16 %v1101
        %v1299 = vunpack.c.l.b16 %v1102
        %v1300 = vunpack.c.h.b16 %v1102
        %v1301 = vunpack.c.l.b16 %v1103
        %v1302 = vunpack.c.h.b16 %v1103
        %v1303 = vunpack.c.l.b16 %v1104
        %v1304 = vunpack.c.h.b16 %v1104
        %v1305 = vunpack.c.l.b16 %v1105
        %v1306 = vunpack.c.h.b16 %v1105
        %v1307 = vunpack.c.l.b16 %v1106
        %v1308 = vunpack.c.h.b16 %v1106
        %v1309 = vunpack.c.l.b16 %v1107
        %v1310 = vunpack.c.h.b16 %v1107
        %v1311 = vunpack.c.l.b16 %v1108
        %v1312 = vunpack.c.h.b16 %v1108
        %v1313 = vpack.c.b16 %v1187, %v1185
        %v1314 = vpack.c.b16 %v1188, %v1186
        %v1315 = vpack.c.b16 %v1191, %v1189
        %v1316 = vpack.c.b16 %v1192, %v1190
        %v1317 = vpack.c.b16 %v1195, %v1193
        %v1318 = vpack.c.b16 %v1196, %v1194
        %v1319 = vpack.c.b16 %v1199, %v1197
        %v1320 = vpack.c.b16 %v1200, %v1198
        %v1321 = vpack.c.b16 %v1203, %v1201
        %v1322 = vpack.c.b16 %v1204, %v1202
        %v1323 = vpack.c.b16 %v1207, %v1205
        %v1324 = vpack.c.b16 %v1208, %v1206
        %v1325 = vpack.c.b16 %v1211, %v1209
        %v1326 = vpack.c.b16 %v1212, %v1210
        %v1327 = vpack.c.b16 %v1215, %v1213
        %v1328 = vpack.c.b16 %v1216, %v1214
        %v1329 = vpack.c.b16 %v1219, %v1217
        %v1330 = vpack.c.b16 %v1220, %v1218
        %v1331 = vpack.c.b16 %v1223, %v1221
        %v1332 = vpack.c.b16 %v1224, %v1222
        %v1333 = vpack.c.b16 %v1227, %v1225
        %v1334 = vpack.c.b16 %v1228, %v1226
        %v1335 = vpack.c.b16 %v1231, %v1229
        %v1336 = vpack.c.b16 %v1232, %v1230
        %v1337 = vpack.c.b16 %v1235, %v1233
        %v1338 = vpack.c.b16 %v1236, %v1234
        %v1339 = vpack.c.b16 %v1239, %v1237
        %v1340 = vpack.c.b16 %v1240, %v1238
        %v1341 = vpack.c.b16 %v1243, %v1241
        %v1342 = vpack.c.b16 %v1244, %v1242
        %v1343 = vpack.c.b16 %v1247, %v1245
        %v1344 = vpack.c.b16 %v1248, %v1246
        %v1345 = vpack.c.b16 %v1251, %v1249
        %v1346 = vpack.c.b16 %v1252, %v1250
        %v1347 = vpack.c.b16 %v1255, %v1253
        %v1348 = vpack.c.b16 %v1256, %v1254
        %v1349 = vpack.c.b16 %v1259, %v1257
        %v1350 = vpack.c.b16 %v1260, %v1258
        %v1351 = vpack.c.b16 %v1263, %v1261
        %v1352 = vpack.c.b16 %v1264, %v1262
        %v1353 = vpack.c.b16 %v1267, %v1265
        %v1354 = vpack.c.b16 %v1268, %v1266
        %v1355 = vpack.c.b16 %v1271, %v1269
        %v1356 = vpack.c.b16 %v1272, %v1270
        %v1357 = vpack.c.b16 %v1275, %v1273
        %v1358 = vpack.c.b16 %v1276, %v1274
        %v1359 = vpack.c.b16 %v1279, %v1277
        %v1360 = vpack.c.b16 %v1280, %v1278
        %v1361 = vpack.c.b16 %v1283, %v1281
        %v1362 = vpack.c.b16 %v1284, %v1282
        %v1363 = vpack.c.b16 %v1287, %v1285
        %v1364 = vpack.c.b16 %v1288, %v1286
        %v1365 = vpack.c.b16 %v1291, %v1289
        %v1366 = vpack.c.b16 %v1292, %v1290
        %v1367 = vpack.c.b16 %v1295, %v1293
        %v1368 = vpack.c.b16 %v1296, %v1294
        %v1369 = vpack.c.b16 %v1299, %v1297
        %v1370 = vpack.c.b16 %v1300, %v1298
        %v1371 = vpack.c.b16 %v1303, %v1301
        %v1372 = vpack.c.b16 %v1304, %v1302
        %v1373 = vpack.c.b16 %v1307, %v1305
        %v1374 = vpack.c.b16 %v1308, %v1306
        %v1375 = vpack.c.b16 %v1311, %v1309
        %v1376 = vpack.c.b16 %v1312, %v1310
        %1441 = vmatprep.subr.bf16.mxu0 %v1314
        %1442 = vmatpush1.bf16.msra.mxu0 %v1313
        %1443 = vmatprep.subr.bf16.mxu0 %v1316
        %1444 = vmatpush1.bf16.msra.mxu0 %v1315
        %1445 = vmatprep.subr.bf16.mxu0 %v1318
        %1446 = vmatpush1.bf16.msra.mxu0 %v1317
        %1447 = vmatprep.subr.bf16.mxu0 %v1320
        %1448 = vmatpush1.bf16.msra.mxu0 %v1319
        %1449 = vmatprep.subr.bf16.mxu0 %v1322
        %1450 = vmatpush1.bf16.msra.mxu0 %v1321
        %1451 = vmatprep.subr.bf16.mxu0 %v1324
        %1452 = vmatpush1.bf16.msra.mxu0 %v1323
        %1453 = vmatprep.subr.bf16.mxu0 %v1326
        %1454 = vmatpush1.bf16.msra.mxu0 %v1325
        %1455 = vmatprep.subr.bf16.mxu0 %v1328
        %1456 = vmatpush1.bf16.msra.mxu0 %v1327
        %1457 = vmatprep.subr.bf16.mxu0 %v1330
        %1458 = vmatpush1.bf16.msra.mxu0 %v1329
        %1459 = vmatprep.subr.bf16.mxu0 %v1332
        %1460 = vmatpush1.bf16.msra.mxu0 %v1331
        %1461 = vmatprep.subr.bf16.mxu0 %v1334
        %1462 = vmatpush1.bf16.msra.mxu0 %v1333
        %1463 = vmatprep.subr.bf16.mxu0 %v1336
        %1464 = vmatpush1.bf16.msra.mxu0 %v1335
        %1465 = vmatprep.subr.bf16.mxu0 %v1338
        %1466 = vmatpush1.bf16.msra.mxu0 %v1337
        %1467 = vmatprep.subr.bf16.mxu0 %v1340
        %1468 = vmatpush1.bf16.msra.mxu0 %v1339
        %1469 = vmatprep.subr.bf16.mxu0 %v1342
        %1470 = vmatpush1.bf16.msra.mxu0 %v1341
        %1471 = vmatprep.subr.bf16.mxu0 %v1344
        %1472 = vmatpush1.bf16.msra.mxu0 %v1343
        %1473 = vmatprep.mubr.bf16.mxu0 %v1042
        %1474 = vmatmul.mubr.bf16.gmra.mrb[0].mxu0 %v1041
        %v1475 = vpop.f32.mrb[0].mxu0
        %v1476 = vadd.f32 %v1114, %v1475
        %v1477 = vpop.f32.mrb[0].mxu0
        %v1478 = vadd.f32 %v1118, %v1477
        %v1479 = vpop.f32.mrb[0].mxu0
        %v1480 = vadd.f32 %v1114, %v1479
        %v1481 = vpop.f32.mrb[0].mxu0
        %v1482 = vadd.f32 %v1118, %v1481
        %1483 = vdwg.mxu0
        %1484 = vmatprep.subr.bf16.mxu0 %v1346
        %1485 = vmatpush1.bf16.msra.mxu0 %v1345
        %1486 = vmatprep.subr.bf16.mxu0 %v1348
        %1487 = vmatpush1.bf16.msra.mxu0 %v1347
        %1488 = vmatprep.subr.bf16.mxu0 %v1350
        %1489 = vmatpush1.bf16.msra.mxu0 %v1349
        %1490 = vmatprep.subr.bf16.mxu0 %v1352
        %1491 = vmatpush1.bf16.msra.mxu0 %v1351
        %1492 = vmatprep.subr.bf16.mxu0 %v1354
        %1493 = vmatpush1.bf16.msra.mxu0 %v1353
        %1494 = vmatprep.subr.bf16.mxu0 %v1356
        %1495 = vmatpush1.bf16.msra.mxu0 %v1355
        %1496 = vmatprep.subr.bf16.mxu0 %v1358
        %1497 = vmatpush1.bf16.msra.mxu0 %v1357
        %1498 = vmatprep.subr.bf16.mxu0 %v1360
        %1499 = vmatpush1.bf16.msra.mxu0 %v1359
        %1500 = vmatprep.subr.bf16.mxu0 %v1362
        %1501 = vmatpush1.bf16.msra.mxu0 %v1361
        %1502 = vmatprep.subr.bf16.mxu0 %v1364
        %1503 = vmatpush1.bf16.msra.mxu0 %v1363
        %1504 = vmatprep.subr.bf16.mxu0 %v1366
        %1505 = vmatpush1.bf16.msra.mxu0 %v1365
        %1506 = vmatprep.subr.bf16.mxu0 %v1368
        %1507 = vmatpush1.bf16.msra.mxu0 %v1367
        %1508 = vmatprep.subr.bf16.mxu0 %v1370
        %1509 = vmatpush1.bf16.msra.mxu0 %v1369
        %1510 = vmatprep.subr.bf16.mxu0 %v1372
        %1511 = vmatpush1.bf16.msra.mxu0 %v1371
        %1512 = vmatprep.subr.bf16.mxu0 %v1374
        %1513 = vmatpush1.bf16.msra.mxu0 %v1373
        %1514 = vmatprep.subr.bf16.mxu0 %v1376
        %1515 = vmatpush1.bf16.msra.mxu0 %v1375
        %1516 = vmatprep.mubr.bf16.mxu0 %v1044
        %1517 = vmatmul.mubr.bf16.gmra.mrb[0].mxu0 %v1043
        %v1518 = vpop.f32.mrb[0].mxu0
        %v1519 = vadd.f32 %v1476, %v1518
        %v1520 = vpop.f32.mrb[0].mxu0
        %v1521 = vadd.f32 %v1478, %v1520
        %v1522 = vpop.f32.mrb[0].mxu0
        %v1523 = vadd.f32 %v1480, %v1522
        %v1524 = vpop.f32.mrb[0].mxu0
        %v1525 = vadd.f32 %v1482, %v1524
        %1526 = vdwg.mxu0
        %v1527 = vmax.f32 %v1519, %v1521
        %1528 = vmax.xlane.f32.xlu0 %v1527
        %v1529 = vpop.xlane.xlu0 %1528
        %v1530 = vmax.f32 %v1523, %v1525
        %1531 = vmax.xlane.f32.xlu0 %v1530
        %v1532 = vpop.xlane.xlu0 %1531
        %v1533 = vsub.f32 %v1519, %v1529
        %v1534 = vsub.f32 %v1521, %v1529
        %v1535 = vsub.f32 %v1523, %v1532
        %v1536 = vsub.f32 %v1525, %v1532
        %v1537 = vmul.f32 %v1533, 1.442695
        %v1538 = vpow.pop %v1537
        %v1539 = vmul.f32 %v1534, 1.442695
        %v1540 = vpow.pop %v1539
        %v1541 = vmul.f32 %v1535, 1.442695
        %v1542 = vpow.pop %v1541
        %v1543 = vmul.f32 %v1536, 1.442695
        %v1544 = vpow.pop %v1543
        %v1545 = vadd.f32 %v1538, %v1540
        %1546 = vadd.xlane.f32.xlu0 %v1545
        %v1547 = vpop.xlane.xlu0 %1546
        %v1548 = vadd.f32 %v1542, %v1544
        %1549 = vadd.xlane.f32.xlu0 %v1548
        %v1550 = vpop.xlane.xlu0 %1549
        %v1551 = vrcp.pop %v1547
        %v1552 = vrcp.pop %v1550
        %v1553 = vmul.f32 %v1538, %v1551
        %v1554 = vmul.f32 %v1540, %v1551
        %v1555 = vmul.f32 %v1542, %v1552
        %v1556 = vmul.f32 %v1544, %v1552
        %1557 = vst [vmem:[%s341] sm:$0xff] %v1553
        %1558 = vst [vmem:[%s341 + $0x8] sm:$0xff] %v1554
        %1559 = vst [vmem:[%s341 + $0x10] sm:$0xff] %v1555
        %1560 = vst [vmem:[%s341 + $0x18] sm:$0xff] %v1556
        %s1561 = sand.u32 %s186, 1
        %s1562 = scalar_lea.sflag [#allocation4], %s1561
        %s1563 = sand.u32 %s186, 1
        %s1564 = smul.addr %s1563, 32
        %s1565 = scalar_lea.vmem [#allocation10], %s1564
        // Predicated region
        $region65: #{tpu_custom_call.1} parent=47 // pred_check
          %p1566 = pneg %p196
        $region66: #{tpu_custom_call.1} parent=47 // pred_check_branch
          %1568 = sbr.rel (%p1566) target = $region68
        $region67: #{tpu_custom_call.1} parent=47 // pred_region
          %s1569 = smul.u32 2, %s26
          %s1571 = ssub.s32 512, 512
          %1572 = vsyncadd %s1562, %s1571
          %s1573 = smul.addr %s1569, 2
          %s1574 = smul.addr %s1573, 128
          %s1575 = scalar_lea.hbm %s7, %s1574
          %s1576 = sshll.u32 %s1565, 4
          %s1577 = int_to_ptr.vmem [resolvable:$true] %s1576
          %1582 = dma.vmem_to_hbm [thread:$0]  %s1577, 512, %s1575, %s1562, 256, 256, 16
        $region68: #{tpu_custom_call.1} parent=47 // pred_fallthru
          _
      $region48: #{tpu_custom_call.1} parent=5 // pred_fallthru
        _
      %p1583 = scmp.le.s32.totalorder 2, %s21
      // Predicated region
      $region69: #{tpu_custom_call.1} parent=5 // pred_check
        %p1584 = pneg %p1583
      $region70: #{tpu_custom_call.1} parent=5 // pred_check_branch
        %1586 = sbr.rel (%p1584) target = $region72
      $region71: #{tpu_custom_call.1} parent=5 // pred_region
        %s1587 = ssub.s32 %s21, 2
        // Predicated region
        $region73: #{tpu_custom_call.1} parent=71 // pred_check
          %p1588 = pneg %p202
        $region74: #{tpu_custom_call.1} parent=71 // pred_check_branch
          %1590 = sbr.rel (%p1588) target = $region76
        $region75: #{tpu_custom_call.1} parent=71 // pred_region
          %s1591 = sand.u32 %s187, 1
          %s1592 = scalar_lea.sflag [#allocation4], %s1591
          %s1593 = sand.u32 %s187, 1
          %s1594 = smul.addr %s1593, 32
          %s1595 = scalar_lea.vmem [#allocation10], %s1594
          %1596 = dma.done %s1592, 512
        $region76: #{tpu_custom_call.1} parent=71 // pred_fallthru
          _
      $region72: #{tpu_custom_call.1} parent=5 // pred_fallthru
        _
    $region6: #{tpu_custom_call.1} parent=1 // loop_footer
      %s25 = sadd.s32 1, %s21
    $region7: #{tpu_custom_call.1} parent=1 // loop_footer_branch
      %20 = sbr.rel target = $region3
    $region8: #{tpu_custom_call.1} parent=1 // loop_exit
      _
    %1597 = vsyncpa [#allocation3], 1
    %s1598 = scalar_lea.sflag [#allocation3], 1
    %1599 = vsyncpa %s1598, 1
    %1600 = vsyncpa [#allocation6], 1
    %1601 = vsyncpa [#allocation9], 1
    %1602 = vsyncpa [#allocation4], 1
    %s1603 = scalar_lea.sflag [#allocation4], 1
    %1604 = vsyncpa %s1603, 1

</llo_original>
